<compile_context>
chip_gen: v5e
topology: v5e:2x2
jax: 0.10.0
libtpu: 0.0.40
codegen_flags: <defaults>
</compile_context>

<pallas_src>
import functools

import jax
import jax.numpy as jnp
from jax import lax
from jax.experimental import pallas as pl
from jax.experimental.pallas import tpu as pltpu


LANE = 128


# ---------------------------------------------------------------------------
# Small helpers
# ---------------------------------------------------------------------------

def _round_up(n, m):
    return ((n + m - 1) // m) * m


def _vmem_limit_bytes():
    # 80% of the per-core VMEM capacity: ~51 MiB on v7x (64 MiB physical),
    # ~102 MiB on v5e/v6e (128 MiB physical).  Fallback if the query fails.
    try:
        cap = pltpu.get_tpu_info().vmem_capacity_bytes
    except Exception:
        cap = 64 * 1024 * 1024
    return int(cap * 0.8)


def _spec(shape, index_map, buffers=None):
    """BlockSpec with optional pipeline depth (single-buffer resident weights)."""
    if buffers is None:
        return pl.BlockSpec(shape, index_map)
    try:
        return pl.BlockSpec(shape, index_map, pipeline_mode=pl.Buffered(buffers))
    except Exception:
        return pl.BlockSpec(shape, index_map)  # older jax: default buffering


# ---------------------------------------------------------------------------
# One-time parameter packing (hoisted out of the per-call hot path)
# ---------------------------------------------------------------------------

def params_from_gate_layers(w_f, b_f, w_i, b_i, w_c, b_c, w_o, b_o, input_dim):
    """Map this module's lin_f/lin_i/lin_c/lin_o (each nn.Linear(D+H, H), i.e.
    weight (H, D+H), bias (H,)) to packed Wx (D, 4H), Wh (H, 4H), b (4H,) with
    gate order [f, i, c, o]."""
    ws = [w_f, w_i, w_c, w_o]
    bs = [b_f, b_i, b_c, b_o]
    wx = jnp.concatenate([w[:, :input_dim].T for w in ws], axis=1)   # (D, 4H)
    wh = jnp.concatenate([w[:, input_dim:].T for w in ws], axis=1)   # (H, 4H)
    b = jnp.concatenate(bs, axis=0)                                  # (4H,)
    return wx, wh, b


def _pack_gate_cols(a, H, Hp):
    """(..., 4H) -> (..., 4Hp); gate k occupies cols [k*Hp, k*Hp+H), rest 0."""
    out = jnp.zeros(a.shape[:-1] + (4 * Hp,), a.dtype)
    for k in range(4):
        out = out.at[..., k * Hp:k * Hp + H].set(a[..., k * H:(k + 1) * H])
    return out


def prepare_lstm_params(wx, wh, b, *, lane=LANE, param_dtype=jnp.bfloat16):
    """One-time packing: lane-align the gate columns (H -> Hp), pad Wx rows to
    Dp and Wh rows to Hp, cast weights to `param_dtype` (bf16 MXU path).
    Zero-padded columns + zero bias keep all padded state lanes exactly 0."""
    D = wx.shape[0]
    H = wh.shape[0]
    Hp = _round_up(H, lane)
    Dp = _round_up(D, lane)
    wx_rows = jnp.pad(wx.astype(jnp.float32), ((0, Dp - D), (0, 0)))
    wx_p = _pack_gate_cols(wx_rows, H, Hp).astype(param_dtype)          # (Dp, 4Hp)
    wh_rows = jnp.pad(wh.astype(jnp.float32), ((0, Hp - H), (0, 0)))
    wh_p = _pack_gate_cols(wh_rows, H, Hp).astype(param_dtype)          # (Hp, 4Hp)
    b_p = _pack_gate_cols(b.reshape(1, 4 * H).astype(jnp.float32), H, Hp)  # (1, 4Hp) f32
    return wx_p, wh_p, b_p


# ---------------------------------------------------------------------------
# Kernels
# ---------------------------------------------------------------------------

def lstm_cell_kernel(x_ref, h_ref, c_ref, wx_ref, wh_ref, b_ref,
                     h_out_ref, c_out_ref):
    """One LSTM step for one batch tile.  bf16 MXU inputs, f32 gate math."""
    Hp = h_ref.shape[-1]
    z = jnp.dot(x_ref[...], wx_ref[...], preferred_element_type=jnp.float32)
    z = z + jnp.dot(h_ref[...].astype(wh_ref.dtype), wh_ref[...],
                    preferred_element_type=jnp.float32)
    z = z + b_ref[...]

    f = jax.nn.sigmoid(z[:, 0 * Hp:1 * Hp])
    i = jax.nn.sigmoid(z[:, 1 * Hp:2 * Hp])
    g = jnp.tanh(z[:, 2 * Hp:3 * Hp])
    o = jax.nn.sigmoid(z[:, 3 * Hp:4 * Hp])

    c_new = f * c_ref[...] + i * g
    h_new = o * jnp.tanh(c_new)

    h_out_ref[...] = h_new.astype(h_out_ref.dtype)
    c_out_ref[...] = c_new.astype(c_out_ref.dtype)


def lstm_seq_kernel(zx_ref, h0_ref, c0_ref, wh_ref, hs_ref, c_last_ref,
                    h_s, c_s, *, seq_len, block_t, mask_tail):
    """TT timesteps per grid iteration.  zx_t = x_t @ Wx + b is precomputed and
    streamed; only h @ Wh stays in the serial loop.  h/c carried in VMEM."""
    tb = pl.program_id(1)                     # time-block index (grid = (batch, time))
    Hp = h_s.shape[-1]

    @pl.when(tb == 0)
    def _():
        h_s[...] = h0_ref[...]
        c_s[...] = c0_ref[...]

    wh = wh_ref[...]                          # resident bf16 weights, loaded once/iter
    h = h_s[...]
    c = c_s[...]

    def step(s, carry):
        h, c = carry
        z = zx_ref[s] + jnp.dot(h.astype(wh.dtype), wh,
                                preferred_element_type=jnp.float32)
        f = jax.nn.sigmoid(z[:, 0 * Hp:1 * Hp])
        i = jax.nn.sigmoid(z[:, 1 * Hp:2 * Hp])
        g = jnp.tanh(z[:, 2 * Hp:3 * Hp])
        o = jax.nn.sigmoid(z[:, 3 * Hp:4 * Hp])
        c_new = f * c + i * g
        h_new = o * jnp.tanh(c_new)
        if mask_tail:  # static flag: only emitted when T was padded up to Tp
            valid = (tb * block_t + s) < seq_len
            h_new = jnp.where(valid, h_new, h)
            c_new = jnp.where(valid, c_new, c)
        hs_ref[s] = h_new.astype(hs_ref.dtype)
        return h_new, c_new

    h, c = lax.fori_loop(0, block_t, step, (h, c), unroll=True)

    h_s[...] = h
    c_s[...] = c

    @pl.when(tb == pl.num_programs(1) - 1)
    def _():
        c_last_ref[...] = c.astype(c_last_ref.dtype)


# ---------------------------------------------------------------------------
# Wrappers
# ---------------------------------------------------------------------------

def lstm_cell_pallas(x, state, params, *, batch_tile=256):
    """Single LSTM step (matches the module forward).  x: (B, D); state=(h, c)
    each (B, H); params = prepare_lstm_params(...).  Returns (h, (h, c))."""
    wx_p, wh_p, b_p = params
    h, c = state
    B, D = x.shape
    H = h.shape[1]
    Dp = wx_p.shape[0]
    Hp = wh_p.shape[0]

    TB = min(_round_up(B, 16), _round_up(batch_tile, 16))   # bf16 sublane packing
    Bp = _round_up(B, TB)

    x_p = jnp.pad(x.astype(wx_p.dtype), ((0, Bp - B), (0, Dp - D)))
    h_p = jnp.pad(h.astype(jnp.float32), ((0, Bp - B), (0, Hp - H)))
    c_p = jnp.pad(c.astype(jnp.float32), ((0, Bp - B), (0, Hp - H)))

    h_new, c_new = pl.pallas_call(
        lstm_cell_kernel,
        grid=(Bp // TB,),
        in_specs=[
            pl.BlockSpec((TB, Dp), lambda i: (i, 0)),            # x   (batch tile)
            pl.BlockSpec((TB, Hp), lambda i: (i, 0)),            # h
            pl.BlockSpec((TB, Hp), lambda i: (i, 0)),            # c
            _spec((Dp, 4 * Hp), lambda i: (0, 0), buffers=1),    # Wx  (resident, 1-buf)
            _spec((Hp, 4 * Hp), lambda i: (0, 0), buffers=1),    # Wh  (resident, 1-buf)
            _spec((1, 4 * Hp), lambda i: (0, 0), buffers=1),     # b   (resident, 1-buf)
        ],
        out_specs=[
            pl.BlockSpec((TB, Hp), lambda i: (i, 0)),
            pl.BlockSpec((TB, Hp), lambda i: (i, 0)),
        ],
        out_shape=(
            jax.ShapeDtypeStruct((Bp, Hp), jnp.float32),
            jax.ShapeDtypeStruct((Bp, Hp), jnp.float32),
        ),
        input_output_aliases={1: 0, 2: 1},                       # h/c updated in place
        compiler_params=pltpu.CompilerParams(
            dimension_semantics=("parallel",),
            vmem_limit_bytes=_vmem_limit_bytes(),
        ),
    )(x_p, h_p, c_p, wx_p, wh_p, b_p)

    h_new = h_new[:B, :H]
    c_new = c_new[:B, :H]
    return h_new, (h_new, c_new)


def lstm_sequence_pallas(xs, state, params, *, time_block=16, batch_tile=256,
                         hs_dtype=jnp.float32):
    """All T steps fused.  xs: (T, B, D).  Returns (hs, (h_T, c_T)).
    zx = xs @ Wx + b is one big MXU matmul outside the recurrence; the Pallas
    kernel streams zx per time block and keeps only h @ Wh in the serial loop."""
    wx_p, wh_p, b_p = params
    h0, c0 = state
    T, B, D = xs.shape
    H = h0.shape[1]
    Dp = wx_p.shape[0]
    Hp = wh_p.shape[0]

    TBB = min(_round_up(B, 16), _round_up(batch_tile, 16))
    Bp = _round_up(B, TBB)
    TT = min(time_block, T)
    Tp = _round_up(T, TT)

    # Time-independent input projection: (Tp*Bp, Dp) x (Dp, 4Hp), bias folded in.
    xs_p = jnp.pad(xs.astype(wx_p.dtype),
                   ((0, Tp - T), (0, Bp - B), (0, Dp - D)))
    zx = jnp.einsum("tbd,dg->tbg", xs_p, wx_p,
                    preferred_element_type=jnp.float32) + b_p      # (Tp, Bp, 4Hp) f32

    h_p = jnp.pad(h0.astype(jnp.float32), ((0, Bp - B), (0, Hp - H)))
    c_p = jnp.pad(c0.astype(jnp.float32), ((0, Bp - B), (0, Hp - H)))

    kernel = functools.partial(lstm_seq_kernel, seq_len=T, block_t=TT,
                               mask_tail=(Tp != T))

    hs, c_last = pl.pallas_call(
        kernel,
        grid=(Bp // TBB, Tp // TT),                                # (batch, time)
        in_specs=[
            pl.BlockSpec((TT, TBB, 4 * Hp), lambda i, t: (t, i, 0)),  # zx (streamed)
            pl.BlockSpec((TBB, Hp), lambda i, t: (i, 0)),             # h0 (per tile)
            pl.BlockSpec((TBB, Hp), lambda i, t: (i, 0)),             # c0 (per tile)
            _spec((Hp, 4 * Hp), lambda i, t: (0, 0), buffers=1),      # Wh (resident)
        ],
        out_specs=[
            pl.BlockSpec((TT, TBB, Hp), lambda i, t: (t, i, 0)),      # hs per block
            pl.BlockSpec((TBB, Hp), lambda i, t: (i, 0)),             # final c
        ],
        out_shape=(
            jax.ShapeDtypeStruct((Tp, Bp, Hp), hs_dtype),
            jax.ShapeDtypeStruct((Bp, Hp), jnp.float32),
        ),
        scratch_shapes=[
            pltpu.VMEM((TBB, Hp), jnp.float32),                       # h carry
            pltpu.VMEM((TBB, Hp), jnp.float32),                       # c carry
        ],
        compiler_params=pltpu.CompilerParams(
            dimension_semantics=("parallel", "arbitrary"),            # batch || time
            vmem_limit_bytes=_vmem_limit_bytes(),
        ),
    )(zx, h_p, c_p, wh_p)

    hs = hs[:T, :B, :H]
    return hs, (hs[-1].astype(jnp.float32), c_last[:B, :H])


# ---------------------------------------------------------------------------
# Pure-JAX reference (mirrors the PyTorch module exactly: cat + 4 Linear layers)
# ---------------------------------------------------------------------------

def lstm_cell_ref(x, state, gate_params):
    h, c = state
    (wf, bf), (wi, bi), (wc, bc), (wo, bo) = gate_params
    xh = jnp.concatenate([x, h], axis=1)
    f = jax.nn.sigmoid(xh @ wf.T + bf)
    i = jax.nn.sigmoid(xh @ wi.T + bi)
    g = jnp.tanh(xh @ wc.T + bc)
    o = jax.nn.sigmoid(xh @ wo.T + bo)
    c_new = f * c + i * g
    h_new = o * jnp.tanh(c_new)
    return h_new, (h_new, c_new)


# ---------------------------------------------------------------------------
# Demo / test
# ---------------------------------------------------------------------------

if __name__ == "__main__":
    B, D_IN, H, T = 8, 16, 32, 8

    key = jax.random.PRNGKey(0)
    kx, kh, kc, ks, kg = jax.random.split(key, 5)

    x = jax.random.normal(kx, (B, D_IN), dtype=jnp.float32)
    h0 = jax.random.normal(kh, (B, H), dtype=jnp.float32)
    c0 = jax.random.normal(kc, (B, H), dtype=jnp.float32)
    xs = jax.random.normal(ks, (T, B, D_IN), dtype=jnp.float32)

    # Per-gate nn.Linear(D_IN + H, H) weights (mirrors the module's init).
    def init_linear(k, out_dim, in_dim):
        kw, kb = jax.random.split(k)
        bound = 1.0 / (in_dim ** 0.5)
        w = jax.random.uniform(kw, (out_dim, in_dim), minval=-bound,
                               maxval=bound, dtype=jnp.float32)
        b = jax.random.uniform(kb, (out_dim,), minval=-bound,
                               maxval=bound, dtype=jnp.float32)
        return w, b

    gkeys = jax.random.split(kg, 4)
    gate_params = tuple(init_linear(gk, H, D_IN + H) for gk in gkeys)
    (wf, bf), (wi, bi), (wc, bc), (wo, bo) = gate_params

    # One-time packing (hoisted out of the per-call hot path).
    wx, wh, b = params_from_gate_layers(wf, bf, wi, bi, wc, bc, wo, bo, D_IN)
    params = prepare_lstm_params(wx, wh, b)          # bf16 weights, f32 bias

    # --- single step (matches the module's forward signature) ---------------
    step_fn = jax.jit(lstm_cell_pallas)
    out, (h1, c1) = step_fn(x, (h0, c0), params)
    jax.block_until_ready((out, h1, c1))

    ref_out, (ref_h, ref_c) = lstm_cell_ref(x, (h0, c0), gate_params)
    assert jnp.allclose(out, ref_out, atol=2e-2, rtol=2e-2)
    assert jnp.allclose(h1, ref_h, atol=2e-2, rtol=2e-2)
    assert jnp.allclose(c1, ref_c, atol=2e-2, rtol=2e-2)

    # --- fused sequence (x-projection hoisted, Wh resident, state in VMEM) ---
    seq_fn = jax.jit(lstm_sequence_pallas)
    hs, (hT, cT) = seq_fn(xs, (h0, c0), params)
    jax.block_until_ready((hs, hT, cT))

    rh, rc = h0, c0
    ref_hs = []
    for t in range(T):
        out_t, (rh, rc) = lstm_cell_ref(xs[t], (rh, rc), gate_params)
        ref_hs.append(out_t)
    ref_hs = jnp.stack(ref_hs)

    assert jnp.allclose(hs, ref_hs, atol=5e-2, rtol=5e-2)
    assert jnp.allclose(hT, ref_hs[-1], atol=5e-2, rtol=5e-2)
    assert jnp.allclose(cT, rc, atol=5e-2, rtol=5e-2)

    print("KERNEL_OK")
</pallas_src>

<mosaic_0001>
module attributes {stable_mosaic.version = 11 : i64} {
  func.func @lstm_cell_kernel(%arg0: i32, %arg1: memref<16x128xbf16, #tpu.memory_space<vmem>>, %arg2: memref<16x128xf32, #tpu.memory_space<vmem>>, %arg3: memref<16x128xf32, #tpu.memory_space<vmem>>, %arg4: memref<128x512xbf16, #tpu.memory_space<vmem>>, %arg5: memref<128x512xbf16, #tpu.memory_space<vmem>>, %arg6: memref<1x512xf32, #tpu.memory_space<vmem>>, %arg7: memref<16x128xf32, #tpu.memory_space<vmem>>, %arg8: memref<16x128xf32, #tpu.memory_space<vmem>>) attributes {dimension_semantics = [#tpu.dimension_semantics<parallel>], iteration_bounds = array<i64: 1>, scalar_prefetch = 0 : i64, scratch_operands = 0 : i64, tpu.core_type = #tpu.core_type<tc>, window_params = [{transform_indices = @transform_0, window_bounds = array<i64: 16, 128>}, {transform_indices = @transform_1, window_bounds = array<i64: 16, 128>}, {transform_indices = @transform_2, window_bounds = array<i64: 16, 128>}, {pipeline_mode = #tpu.pipeline_mode<synchronous>, transform_indices = @transform_3, window_bounds = array<i64: 128, 512>}, {pipeline_mode = #tpu.pipeline_mode<synchronous>, transform_indices = @transform_4, window_bounds = array<i64: 128, 512>}, {pipeline_mode = #tpu.pipeline_mode<synchronous>, transform_indices = @transform_5, window_bounds = array<i64: 1, 512>}, {transform_indices = @transform_6, window_bounds = array<i64: 16, 128>}, {transform_indices = @transform_7, window_bounds = array<i64: 16, 128>}]} {
    %c0 = arith.constant 0 : index
    %c0_0 = arith.constant 0 : index
    %0 = vector.load %arg1[%c0, %c0_0] : memref<16x128xbf16, #tpu.memory_space<vmem>>, vector<16x128xbf16>
    %c0_1 = arith.constant 0 : index
    %c0_2 = arith.constant 0 : index
    %1 = vector.load %arg4[%c0_1, %c0_2] : memref<128x512xbf16, #tpu.memory_space<vmem>>, vector<128x512xbf16>
    %cst = arith.constant dense<0.000000e+00> : vector<16x512xf32>
    %2 = tpu.matmul %0, %1, %cst {dimension_numbers = #tpu.dot_dimension_numbers<[1], [0], [0], [1], [0, 0, 1, 1], [], []>} : vector<16x128xbf16>, vector<128x512xbf16>, vector<16x512xf32> -> vector<16x512xf32>
    %c0_3 = arith.constant 0 : index
    %c0_4 = arith.constant 0 : index
    %3 = vector.load %arg2[%c0_3, %c0_4] : memref<16x128xf32, #tpu.memory_space<vmem>>, vector<16x128xf32>
    %4 = arith.truncf %3 : vector<16x128xf32> to vector<16x128xbf16>
    %c0_5 = arith.constant 0 : index
    %c0_6 = arith.constant 0 : index
    %5 = vector.load %arg5[%c0_5, %c0_6] : memref<128x512xbf16, #tpu.memory_space<vmem>>, vector<128x512xbf16>
    %cst_7 = arith.constant dense<0.000000e+00> : vector<16x512xf32>
    %6 = tpu.matmul %4, %5, %cst_7 {dimension_numbers = #tpu.dot_dimension_numbers<[1], [0], [0], [1], [0, 0, 1, 1], [], []>} : vector<16x128xbf16>, vector<128x512xbf16>, vector<16x512xf32> -> vector<16x512xf32>
    %7 = arith.addf %2, %6 : vector<16x512xf32>
    %c0_8 = arith.constant 0 : index
    %c0_9 = arith.constant 0 : index
    %8 = vector.load %arg6[%c0_8, %c0_9] : memref<1x512xf32, #tpu.memory_space<vmem>>, vector<1x512xf32>
    %9 = vector.broadcast %8 : vector<1x512xf32> to vector<16x512xf32>
    %10 = arith.addf %7, %9 : vector<16x512xf32>
    %11 = vector.extract_strided_slice %10 {offsets = [0, 0], sizes = [16, 128], strides = [1, 1]} : vector<16x512xf32> to vector<16x128xf32>
    %12 = arith.negf %11 : vector<16x128xf32>
    %13 = math.exp %12 : vector<16x128xf32>
    %cst_10 = arith.constant 1.000000e+00 : f32
    %14 = vector.broadcast %cst_10 : f32 to vector<16x128xf32>
    %15 = arith.addf %14, %13 : vector<16x128xf32>
    %16 = arith.divf %14, %15 : vector<16x128xf32>
    %17 = vector.extract_strided_slice %10 {offsets = [0, 128], sizes = [16, 128], strides = [1, 1]} : vector<16x512xf32> to vector<16x128xf32>
    %18 = arith.negf %17 : vector<16x128xf32>
    %19 = math.exp %18 : vector<16x128xf32>
    %cst_11 = arith.constant 1.000000e+00 : f32
    %20 = vector.broadcast %cst_11 : f32 to vector<16x128xf32>
    %21 = arith.addf %20, %19 : vector<16x128xf32>
    %22 = arith.divf %20, %21 : vector<16x128xf32>
    %23 = vector.extract_strided_slice %10 {offsets = [0, 256], sizes = [16, 128], strides = [1, 1]} : vector<16x512xf32> to vector<16x128xf32>
    %24 = math.tanh %23 : vector<16x128xf32>
    %25 = vector.extract_strided_slice %10 {offsets = [0, 384], sizes = [16, 128], strides = [1, 1]} : vector<16x512xf32> to vector<16x128xf32>
    %26 = arith.negf %25 : vector<16x128xf32>
    %27 = math.exp %26 : vector<16x128xf32>
    %cst_12 = arith.constant 1.000000e+00 : f32
    %28 = vector.broadcast %cst_12 : f32 to vector<16x128xf32>
    %29 = arith.addf %28, %27 : vector<16x128xf32>
    %30 = arith.divf %28, %29 : vector<16x128xf32>
    %c0_13 = arith.constant 0 : index
    %c0_14 = arith.constant 0 : index
    %31 = vector.load %arg3[%c0_13, %c0_14] : memref<16x128xf32, #tpu.memory_space<vmem>>, vector<16x128xf32>
    %32 = arith.mulf %16, %31 : vector<16x128xf32>
    %33 = arith.mulf %22, %24 : vector<16x128xf32>
    %34 = arith.addf %32, %33 : vector<16x128xf32>
    %35 = math.tanh %34 : vector<16x128xf32>
    %36 = arith.mulf %30, %35 : vector<16x128xf32>
    %c0_15 = arith.constant 0 : index
    %c0_16 = arith.constant 0 : index
    %37 = vector.load %arg7[%c0_15, %c0_16] : memref<16x128xf32, #tpu.memory_space<vmem>>, vector<16x128xf32>
    tpu.vector_store %arg7[%c0_15, %c0_16], %36 {strides = array<i32>} : memref<16x128xf32, #tpu.memory_space<vmem>>, vector<16x128xf32>,
    %c0_17 = arith.constant 0 : index
    %c0_18 = arith.constant 0 : index
    %38 = vector.load %arg8[%c0_17, %c0_18] : memref<16x128xf32, #tpu.memory_space<vmem>>, vector<16x128xf32>
    tpu.vector_store %arg8[%c0_17, %c0_18], %34 {strides = array<i32>} : memref<16x128xf32, #tpu.memory_space<vmem>>, vector<16x128xf32>,
    return
  }
  func.func @transform_0(%arg0: i32) -> (i32, i32) {
    %c0_i32 = arith.constant 0 : i32
    %c0_i32_0 = arith.constant 0 : i32
    return %arg0, %c0_i32 : i32, i32
  }
  func.func @transform_1(%arg0: i32) -> (i32, i32) {
    %c0_i32 = arith.constant 0 : i32
    %c0_i32_0 = arith.constant 0 : i32
    return %arg0, %c0_i32 : i32, i32
  }
  func.func @transform_2(%arg0: i32) -> (i32, i32) {
    %c0_i32 = arith.constant 0 : i32
    %c0_i32_0 = arith.constant 0 : i32
    return %arg0, %c0_i32 : i32, i32
  }
  func.func @transform_3(%arg0: i32) -> (i32, i32) {
    %c0_i32 = arith.constant 0 : i32
    %c0_i32_0 = arith.constant 0 : i32
    %c0_i32_1 = arith.constant 0 : i32
    return %c0_i32, %c0_i32_0 : i32, i32
  }
  func.func @transform_4(%arg0: i32) -> (i32, i32) {
    %c0_i32 = arith.constant 0 : i32
    %c0_i32_0 = arith.constant 0 : i32
    %c0_i32_1 = arith.constant 0 : i32
    return %c0_i32, %c0_i32_0 : i32, i32
  }
  func.func @transform_5(%arg0: i32) -> (i32, i32) {
    %c0_i32 = arith.constant 0 : i32
    %c0_i32_0 = arith.constant 0 : i32
    %c0_i32_1 = arith.constant 0 : i32
    return %c0_i32, %c0_i32_0 : i32, i32
  }
  func.func @transform_6(%arg0: i32) -> (i32, i32) {
    %c0_i32 = arith.constant 0 : i32
    %c0_i32_0 = arith.constant 0 : i32
    return %arg0, %c0_i32 : i32, i32
  }
  func.func @transform_7(%arg0: i32) -> (i32, i32) {
    %c0_i32 = arith.constant 0 : i32
    %c0_i32_0 = arith.constant 0 : i32
    return %arg0, %c0_i32 : i32, i32
  }
}

</mosaic_0001>

<llo_original>
// kernel: lstm_cell_pallas.1
$region0: #{lstm_cell_pallas.1}
  #allocation0 [shape = 'u32[]', space=smem, size = 0x4, offset = 0x4, fixed_abs, tag = 'smem constant byte address 0x4 - core index']
  #allocation1 [shape = 'u32[72,128]{1,0:T(1,128)}', space=vmem, size = 0x9000, scoped, tag = 'internal scratch']
  %s0 = inlined_call_operand.vmem [shape: bf16[16,128], index: 0, kind: input, shape index: {}]
  %s1 = inlined_call_operand.vmem [shape: f32[16,128], index: 1, kind: input, shape index: {}, may-alias: {1,6}]
  %s2 = inlined_call_operand.vmem [shape: f32[16,128], index: 2, kind: input, shape index: {}, may-alias: {2,7}]
  %s3 = inlined_call_operand.hbm [shape: bf16[128,512], index: 3, kind: input, shape index: {}]
  %s4 = inlined_call_operand.hbm [shape: bf16[128,512], index: 4, kind: input, shape index: {}]
  %s5 = inlined_call_operand.vmem [shape: f32[1,512], index: 5, kind: input, shape index: {}]
  %s6 = inlined_call_operand.vmem [shape: f32[16,128], index: 6, kind: output, shape index: {0}, may-alias: {1,6}]
  %s7 = inlined_call_operand.vmem [shape: f32[16,128], index: 7, kind: output, shape index: {1}, may-alias: {2,7}]
  %8 = xla_tuple %s6, %s7
  %s9 = sld [smem:[#allocation0]]
  $region50: #{lstm_cell_pallas.1} parent=0
    _
  %s11 = ssub.s32 1, %s9
  %s12 = scalar_select 0, %s11, %s9
  $region1: #{lstm_cell_pallas.1} parent=0
    #allocation2 [shape = 'u8[131072]{0}', space=vmem, size = 0x20000, scoped, tag = 'input window, operand 3, single buffered']
    #allocation3 [shape = 's32[1]{0}', space=sflag, size = 0x4, scoped, tag = 'scoped memory for lstm_cell_pallas.1']
    #allocation4 [shape = 'u8[131072]{0}', space=vmem, size = 0x20000, scoped, tag = 'input window, operand 4, single buffered']
    #allocation5 [shape = 's32[1]{0}', space=sflag, size = 0x4, scoped, tag = 'scoped memory for lstm_cell_pallas.1']
    %13 = vsyncpa [#allocation3], 0
    %14 = vsyncpa [#allocation5], 0
    // Predicated region
    $region2: #{lstm_cell_pallas.1} parent=1 // pred_check
      _
    $region3: #{lstm_cell_pallas.1} parent=1 // pred_check_branch
      %16 = sbr.rel (0) target = $region5
    $region4: #{lstm_cell_pallas.1} parent=1 // pred_region
      _
    $region5: #{lstm_cell_pallas.1} parent=1 // pred_fallthru
      _
    // Predicated region
    $region6: #{lstm_cell_pallas.1} parent=1 // pred_check
      _
    $region7: #{lstm_cell_pallas.1} parent=1 // pred_check_branch
      %18 = sbr.rel (0) target = $region9
    $region8: #{lstm_cell_pallas.1} parent=1 // pred_region
      _
    $region9: #{lstm_cell_pallas.1} parent=1 // pred_fallthru
      _
    // Predicated region
    $region10: #{lstm_cell_pallas.1} parent=1 // pred_check
      _
    $region11: #{lstm_cell_pallas.1} parent=1 // pred_check_branch
      %20 = sbr.rel (0) target = $region13
    $region12: #{lstm_cell_pallas.1} parent=1 // pred_region
      _
    $region13: #{lstm_cell_pallas.1} parent=1 // pred_fallthru
      _
    // Predicated region
    $region14: #{lstm_cell_pallas.1} parent=1 // pred_check
      _
    $region15: #{lstm_cell_pallas.1} parent=1 // pred_check_branch
      %22 = sbr.rel (0) target = $region17
    $region16: #{lstm_cell_pallas.1} parent=1 // pred_region
      %24 = vsyncadd [#allocation3], 0
      %s25 = sshll.u32 %s3, 4
      %s26 = int_to_ptr.hbm [resolvable:$true] %s25
      %s27 = sshll.u32 [#allocation2], 4
      %s28 = int_to_ptr.vmem [resolvable:$true] %s27
      %33 = dma.hbm_to_vmem [thread:$0]  %s26, 4096, %s28, [#allocation3], 256, 256, 16
    $region17: #{lstm_cell_pallas.1} parent=1 // pred_fallthru
      _
    // Predicated region
    $region18: #{lstm_cell_pallas.1} parent=1 // pred_check
      _
    $region19: #{lstm_cell_pallas.1} parent=1 // pred_check_branch
      %35 = sbr.rel (0) target = $region21
    $region20: #{lstm_cell_pallas.1} parent=1 // pred_region
      %37 = vsyncadd [#allocation5], 0
      %s38 = sshll.u32 %s4, 4
      %s39 = int_to_ptr.hbm [resolvable:$true] %s38
      %s40 = sshll.u32 [#allocation4], 4
      %s41 = int_to_ptr.vmem [resolvable:$true] %s40
      %46 = dma.hbm_to_vmem [thread:$0]  %s39, 4096, %s41, [#allocation5], 256, 256, 16
    $region21: #{lstm_cell_pallas.1} parent=1 // pred_fallthru
      _
    // Predicated region
    $region22: #{lstm_cell_pallas.1} parent=1 // pred_check
      _
    $region23: #{lstm_cell_pallas.1} parent=1 // pred_check_branch
      %48 = sbr.rel (0) target = $region25
    $region24: #{lstm_cell_pallas.1} parent=1 // pred_region
      _
    $region25: #{lstm_cell_pallas.1} parent=1 // pred_fallthru
      _
    // Predicated region
    $region26: #{lstm_cell_pallas.1} parent=1 // pred_check
      _
    $region27: #{lstm_cell_pallas.1} parent=1 // pred_check_branch
      %50 = sbr.rel (0) target = $region29
    $region28: #{lstm_cell_pallas.1} parent=1 // pred_region
      %52 = dma.done [#allocation3], 4096
    $region29: #{lstm_cell_pallas.1} parent=1 // pred_fallthru
      _
    // Predicated region
    $region30: #{lstm_cell_pallas.1} parent=1 // pred_check
      _
    $region31: #{lstm_cell_pallas.1} parent=1 // pred_check_branch
      %54 = sbr.rel (0) target = $region33
    $region32: #{lstm_cell_pallas.1} parent=1 // pred_region
      %56 = dma.done [#allocation5], 4096
    $region33: #{lstm_cell_pallas.1} parent=1 // pred_fallthru
      _
    %v57 = vld [vmem:[%s0] sm:$0xf]
    %v58 = vld [vmem:[%s0 + $0x4] sm:$0xf]
    %v59 = vld [vmem:[#allocation2] sm:$0xff]
    %v60 = vld [vmem:[#allocation2 + $0x8] sm:$0xff]
    %v61 = vld [vmem:[#allocation2 + $0x10] sm:$0xff]
    %v62 = vld [vmem:[#allocation2 + $0x18] sm:$0xff]
    %v63 = vld [vmem:[#allocation2 + $0x20] sm:$0xff]
    %v64 = vld [vmem:[#allocation2 + $0x28] sm:$0xff]
    %v65 = vld [vmem:[#allocation2 + $0x30] sm:$0xff]
    %v66 = vld [vmem:[#allocation2 + $0x38] sm:$0xff]
    %v67 = vld [vmem:[#allocation2 + $0x40] sm:$0xff]
    %v68 = vld [vmem:[#allocation2 + $0x48] sm:$0xff]
    %v69 = vld [vmem:[#allocation2 + $0x50] sm:$0xff]
    %v70 = vld [vmem:[#allocation2 + $0x58] sm:$0xff]
    %v71 = vld [vmem:[#allocation2 + $0x60] sm:$0xff]
    %v72 = vld [vmem:[#allocation2 + $0x68] sm:$0xff]
    %v73 = vld [vmem:[#allocation2 + $0x70] sm:$0xff]
    %v74 = vld [vmem:[#allocation2 + $0x78] sm:$0xff]
    %v75 = vld [vmem:[#allocation2 + $0x80] sm:$0xff]
    %v76 = vld [vmem:[#allocation2 + $0x88] sm:$0xff]
    %v77 = vld [vmem:[#allocation2 + $0x90] sm:$0xff]
    %v78 = vld [vmem:[#allocation2 + $0x98] sm:$0xff]
    %v79 = vld [vmem:[#allocation2 + $0xa0] sm:$0xff]
    %v80 = vld [vmem:[#allocation2 + $0xa8] sm:$0xff]
    %v81 = vld [vmem:[#allocation2 + $0xb0] sm:$0xff]
    %v82 = vld [vmem:[#allocation2 + $0xb8] sm:$0xff]
    %v83 = vld [vmem:[#allocation2 + $0xc0] sm:$0xff]
    %v84 = vld [vmem:[#allocation2 + $0xc8] sm:$0xff]
    %v85 = vld [vmem:[#allocation2 + $0xd0] sm:$0xff]
    %v86 = vld [vmem:[#allocation2 + $0xd8] sm:$0xff]
    %v87 = vld [vmem:[#allocation2 + $0xe0] sm:$0xff]
    %v88 = vld [vmem:[#allocation2 + $0xe8] sm:$0xff]
    %v89 = vld [vmem:[#allocation2 + $0xf0] sm:$0xff]
    %v90 = vld [vmem:[#allocation2 + $0xf8] sm:$0xff]
    %v91 = vld [vmem:[%s1] sm:$0xff]
    %v92 = vld [vmem:[%s1 + $0x8] sm:$0xff]
    %v93 = vpack.c.bf16 %v92, %v91
    %v94 = vld [vmem:[#allocation4] sm:$0xff]
    %v95 = vld [vmem:[#allocation4 + $0x8] sm:$0xff]
    %v96 = vld [vmem:[#allocation4 + $0x10] sm:$0xff]
    %v97 = vld [vmem:[#allocation4 + $0x18] sm:$0xff]
    %v98 = vld [vmem:[#allocation4 + $0x20] sm:$0xff]
    %v99 = vld [vmem:[#allocation4 + $0x28] sm:$0xff]
    %v100 = vld [vmem:[#allocation4 + $0x30] sm:$0xff]
    %v101 = vld [vmem:[#allocation4 + $0x38] sm:$0xff]
    %v102 = vld [vmem:[#allocation4 + $0x40] sm:$0xff]
    %v103 = vld [vmem:[#allocation4 + $0x48] sm:$0xff]
    %v104 = vld [vmem:[#allocation4 + $0x50] sm:$0xff]
    %v105 = vld [vmem:[#allocation4 + $0x58] sm:$0xff]
    %v106 = vld [vmem:[#allocation4 + $0x60] sm:$0xff]
    %v107 = vld [vmem:[#allocation4 + $0x68] sm:$0xff]
    %v108 = vld [vmem:[#allocation4 + $0x70] sm:$0xff]
    %v109 = vld [vmem:[#allocation4 + $0x78] sm:$0xff]
    %v110 = vld [vmem:[#allocation4 + $0x80] sm:$0xff]
    %v111 = vld [vmem:[#allocation4 + $0x88] sm:$0xff]
    %v112 = vld [vmem:[#allocation4 + $0x90] sm:$0xff]
    %v113 = vld [vmem:[#allocation4 + $0x98] sm:$0xff]
    %v114 = vld [vmem:[#allocation4 + $0xa0] sm:$0xff]
    %v115 = vld [vmem:[#allocation4 + $0xa8] sm:$0xff]
    %v116 = vld [vmem:[#allocation4 + $0xb0] sm:$0xff]
    %v117 = vld [vmem:[#allocation4 + $0xb8] sm:$0xff]
    %v118 = vld [vmem:[#allocation4 + $0xc0] sm:$0xff]
    %v119 = vld [vmem:[#allocation4 + $0xc8] sm:$0xff]
    %v120 = vld [vmem:[#allocation4 + $0xd0] sm:$0xff]
    %v121 = vld [vmem:[#allocation4 + $0xd8] sm:$0xff]
    %v122 = vld [vmem:[#allocation4 + $0xe0] sm:$0xff]
    %v123 = vld [vmem:[#allocation4 + $0xe8] sm:$0xff]
    %v124 = vld [vmem:[#allocation4 + $0xf0] sm:$0xff]
    %v125 = vld [vmem:[#allocation4 + $0xf8] sm:$0xff]
    %v158 = vunpack.c.l.b16 %v94
    %v159 = vunpack.c.h.b16 %v94
    %v160 = vunpack.c.l.b16 %v95
    %v161 = vunpack.c.h.b16 %v95
    %v162 = vunpack.c.l.b16 %v96
    %v163 = vunpack.c.h.b16 %v96
    %v164 = vunpack.c.l.b16 %v97
    %v165 = vunpack.c.h.b16 %v97
    %v166 = vunpack.c.l.b16 %v98
    %v167 = vunpack.c.h.b16 %v98
    %v168 = vunpack.c.l.b16 %v99
    %v169 = vunpack.c.h.b16 %v99
    %v170 = vunpack.c.l.b16 %v100
    %v171 = vunpack.c.h.b16 %v100
    %v172 = vunpack.c.l.b16 %v101
    %v173 = vunpack.c.h.b16 %v101
    %v174 = vunpack.c.l.b16 %v102
    %v175 = vunpack.c.h.b16 %v102
    %v176 = vunpack.c.l.b16 %v103
    %v177 = vunpack.c.h.b16 %v103
    %v178 = vunpack.c.l.b16 %v104
    %v179 = vunpack.c.h.b16 %v104
    %v180 = vunpack.c.l.b16 %v105
    %v181 = vunpack.c.h.b16 %v105
    %v182 = vunpack.c.l.b16 %v106
    %v183 = vunpack.c.h.b16 %v106
    %v184 = vunpack.c.l.b16 %v107
    %v185 = vunpack.c.h.b16 %v107
    %v186 = vunpack.c.l.b16 %v108
    %v187 = vunpack.c.h.b16 %v108
    %v188 = vunpack.c.l.b16 %v109
    %v189 = vunpack.c.h.b16 %v109
    %v190 = vunpack.c.l.b16 %v110
    %v191 = vunpack.c.h.b16 %v110
    %v192 = vunpack.c.l.b16 %v111
    %v193 = vunpack.c.h.b16 %v111
    %v194 = vunpack.c.l.b16 %v112
    %v195 = vunpack.c.h.b16 %v112
    %v196 = vunpack.c.l.b16 %v113
    %v197 = vunpack.c.h.b16 %v113
    %v198 = vunpack.c.l.b16 %v114
    %v199 = vunpack.c.h.b16 %v114
    %v200 = vunpack.c.l.b16 %v115
    %v201 = vunpack.c.h.b16 %v115
    %v202 = vunpack.c.l.b16 %v116
    %v203 = vunpack.c.h.b16 %v116
    %v204 = vunpack.c.l.b16 %v117
    %v205 = vunpack.c.h.b16 %v117
    %v206 = vunpack.c.l.b16 %v118
    %v207 = vunpack.c.h.b16 %v118
    %v208 = vunpack.c.l.b16 %v119
    %v209 = vunpack.c.h.b16 %v119
    %v210 = vunpack.c.l.b16 %v120
    %v211 = vunpack.c.h.b16 %v120
    %v212 = vunpack.c.l.b16 %v121
    %v213 = vunpack.c.h.b16 %v121
    %v214 = vunpack.c.l.b16 %v122
    %v215 = vunpack.c.h.b16 %v122
    %v216 = vunpack.c.l.b16 %v123
    %v217 = vunpack.c.h.b16 %v123
    %v218 = vunpack.c.l.b16 %v124
    %v219 = vunpack.c.h.b16 %v124
    %v220 = vunpack.c.l.b16 %v125
    %v221 = vunpack.c.h.b16 %v125
    %v222 = vpack.c.b16 %v162, %v158
    %v223 = vpack.c.b16 %v163, %v159
    %v224 = vpack.c.b16 %v164, %v160
    %v225 = vpack.c.b16 %v165, %v161
    %v226 = vpack.c.b16 %v170, %v166
    %v227 = vpack.c.b16 %v171, %v167
    %v228 = vpack.c.b16 %v172, %v168
    %v229 = vpack.c.b16 %v173, %v169
    %v230 = vpack.c.b16 %v178, %v174
    %v231 = vpack.c.b16 %v179, %v175
    %v232 = vpack.c.b16 %v180, %v176
    %v233 = vpack.c.b16 %v181, %v177
    %v234 = vpack.c.b16 %v186, %v182
    %v235 = vpack.c.b16 %v187, %v183
    %v236 = vpack.c.b16 %v188, %v184
    %v237 = vpack.c.b16 %v189, %v185
    %v238 = vpack.c.b16 %v194, %v190
    %v239 = vpack.c.b16 %v195, %v191
    %v240 = vpack.c.b16 %v196, %v192
    %v241 = vpack.c.b16 %v197, %v193
    %v242 = vpack.c.b16 %v202, %v198
    %v243 = vpack.c.b16 %v203, %v199
    %v244 = vpack.c.b16 %v204, %v200
    %v245 = vpack.c.b16 %v205, %v201
    %v246 = vpack.c.b16 %v210, %v206
    %v247 = vpack.c.b16 %v211, %v207
    %v248 = vpack.c.b16 %v212, %v208
    %v249 = vpack.c.b16 %v213, %v209
    %v250 = vpack.c.b16 %v218, %v214
    %v251 = vpack.c.b16 %v219, %v215
    %v252 = vpack.c.b16 %v220, %v216
    %v253 = vpack.c.b16 %v221, %v217
    %286 = vmatpush.bf16.msra.mxu0 %v250
    %287 = vmatpush.bf16.msra.mxu0 %v246
    %288 = vmatpush.bf16.msra.mxu0 %v242
    %289 = vmatpush.bf16.msra.mxu0 %v238
    %290 = vmatpush.bf16.msra.mxu0 %v234
    %291 = vmatpush.bf16.msra.mxu0 %v230
    %292 = vmatpush.bf16.msra.mxu0 %v226
    %293 = vmatpush.bf16.msra.mxu0 %v222
    %294 = vmatmul.bf16.gmra.mxu0 %v93
    %v295 = vpop.f32.mrf.mxu0
    %v296 = vadd.f32 0.0, %v295
    %v297 = vpop.f32.mrf.mxu0
    %v298 = vadd.f32 0.0, %v297
    %299 = vdwg.mxu0
    %300 = vmatpush.bf16.msra.mxu0 %v251
    %301 = vmatpush.bf16.msra.mxu0 %v247
    %302 = vmatpush.bf16.msra.mxu0 %v243
    %303 = vmatpush.bf16.msra.mxu0 %v239
    %304 = vmatpush.bf16.msra.mxu0 %v235
    %305 = vmatpush.bf16.msra.mxu0 %v231
    %306 = vmatpush.bf16.msra.mxu0 %v227
    %307 = vmatpush.bf16.msra.mxu0 %v223
    %308 = vmatmul.bf16.gmra.mxu0 %v93
    %v309 = vpop.f32.mrf.mxu0
    %v310 = vadd.f32 0.0, %v309
    %v311 = vpop.f32.mrf.mxu0
    %v312 = vadd.f32 0.0, %v311
    %313 = vdwg.mxu0
    %314 = vmatpush.bf16.msra.mxu0 %v252
    %315 = vmatpush.bf16.msra.mxu0 %v248
    %316 = vmatpush.bf16.msra.mxu0 %v244
    %317 = vmatpush.bf16.msra.mxu0 %v240
    %318 = vmatpush.bf16.msra.mxu0 %v236
    %319 = vmatpush.bf16.msra.mxu0 %v232
    %320 = vmatpush.bf16.msra.mxu0 %v228
    %321 = vmatpush.bf16.msra.mxu0 %v224
    %322 = vmatmul.bf16.gmra.mxu0 %v93
    %v323 = vpop.f32.mrf.mxu0
    %v324 = vadd.f32 0.0, %v323
    %v325 = vpop.f32.mrf.mxu0
    %v326 = vadd.f32 0.0, %v325
    %327 = vdwg.mxu0
    %328 = vmatpush.bf16.msra.mxu0 %v253
    %329 = vmatpush.bf16.msra.mxu0 %v249
    %330 = vmatpush.bf16.msra.mxu0 %v245
    %331 = vmatpush.bf16.msra.mxu0 %v241
    %332 = vmatpush.bf16.msra.mxu0 %v237
    %333 = vmatpush.bf16.msra.mxu0 %v233
    %334 = vmatpush.bf16.msra.mxu0 %v229
    %335 = vmatpush.bf16.msra.mxu0 %v225
    %336 = vmatmul.bf16.gmra.mxu0 %v93
    %v337 = vpop.f32.mrf.mxu0
    %v338 = vadd.f32 0.0, %v337
    %v339 = vpop.f32.mrf.mxu0
    %v340 = vadd.f32 0.0, %v339
    %341 = vdwg.mxu0
    %v344 = vunpack.c.l.b16 %v57
    %v345 = vunpack.c.l.b16 %v58
    %v346 = vpack.c.b16 %v345, %v344
    %v380 = vunpack.c.l.b16 %v59
    %v381 = vunpack.c.h.b16 %v59
    %v382 = vunpack.c.l.b16 %v60
    %v383 = vunpack.c.h.b16 %v60
    %v384 = vunpack.c.l.b16 %v61
    %v385 = vunpack.c.h.b16 %v61
    %v386 = vunpack.c.l.b16 %v62
    %v387 = vunpack.c.h.b16 %v62
    %v388 = vunpack.c.l.b16 %v63
    %v389 = vunpack.c.h.b16 %v63
    %v390 = vunpack.c.l.b16 %v64
    %v391 = vunpack.c.h.b16 %v64
    %v392 = vunpack.c.l.b16 %v65
    %v393 = vunpack.c.h.b16 %v65
    %v394 = vunpack.c.l.b16 %v66
    %v395 = vunpack.c.h.b16 %v66
    %v396 = vunpack.c.l.b16 %v67
    %v397 = vunpack.c.h.b16 %v67
    %v398 = vunpack.c.l.b16 %v68
    %v399 = vunpack.c.h.b16 %v68
    %v400 = vunpack.c.l.b16 %v69
    %v401 = vunpack.c.h.b16 %v69
    %v402 = vunpack.c.l.b16 %v70
    %v403 = vunpack.c.h.b16 %v70
    %v404 = vunpack.c.l.b16 %v71
    %v405 = vunpack.c.h.b16 %v71
    %v406 = vunpack.c.l.b16 %v72
    %v407 = vunpack.c.h.b16 %v72
    %v408 = vunpack.c.l.b16 %v73
    %v409 = vunpack.c.h.b16 %v73
    %v410 = vunpack.c.l.b16 %v74
    %v411 = vunpack.c.h.b16 %v74
    %v412 = vunpack.c.l.b16 %v75
    %v413 = vunpack.c.h.b16 %v75
    %v414 = vunpack.c.l.b16 %v76
    %v415 = vunpack.c.h.b16 %v76
    %v416 = vunpack.c.l.b16 %v77
    %v417 = vunpack.c.h.b16 %v77
    %v418 = vunpack.c.l.b16 %v78
    %v419 = vunpack.c.h.b16 %v78
    %v420 = vunpack.c.l.b16 %v79
    %v421 = vunpack.c.h.b16 %v79
    %v422 = vunpack.c.l.b16 %v80
    %v423 = vunpack.c.h.b16 %v80
    %v424 = vunpack.c.l.b16 %v81
    %v425 = vunpack.c.h.b16 %v81
    %v426 = vunpack.c.l.b16 %v82
    %v427 = vunpack.c.h.b16 %v82
    %v428 = vunpack.c.l.b16 %v83
    %v429 = vunpack.c.h.b16 %v83
    %v430 = vunpack.c.l.b16 %v84
    %v431 = vunpack.c.h.b16 %v84
    %v432 = vunpack.c.l.b16 %v85
    %v433 = vunpack.c.h.b16 %v85
    %v434 = vunpack.c.l.b16 %v86
    %v435 = vunpack.c.h.b16 %v86
    %v436 = vunpack.c.l.b16 %v87
    %v437 = vunpack.c.h.b16 %v87
    %v438 = vunpack.c.l.b16 %v88
    %v439 = vunpack.c.h.b16 %v88
    %v440 = vunpack.c.l.b16 %v89
    %v441 = vunpack.c.h.b16 %v89
    %v442 = vunpack.c.l.b16 %v90
    %v443 = vunpack.c.h.b16 %v90
    %v444 = vpack.c.b16 %v384, %v380
    %v445 = vpack.c.b16 %v385, %v381
    %v446 = vpack.c.b16 %v386, %v382
    %v447 = vpack.c.b16 %v387, %v383
    %v448 = vpack.c.b16 %v392, %v388
    %v449 = vpack.c.b16 %v393, %v389
    %v450 = vpack.c.b16 %v394, %v390
    %v451 = vpack.c.b16 %v395, %v391
    %v452 = vpack.c.b16 %v400, %v396
    %v453 = vpack.c.b16 %v401, %v397
    %v454 = vpack.c.b16 %v402, %v398
    %v455 = vpack.c.b16 %v403, %v399
    %v456 = vpack.c.b16 %v408, %v404
    %v457 = vpack.c.b16 %v409, %v405
    %v458 = vpack.c.b16 %v410, %v406
    %v459 = vpack.c.b16 %v411, %v407
    %v460 = vpack.c.b16 %v416, %v412
    %v461 = vpack.c.b16 %v417, %v413
    %v462 = vpack.c.b16 %v418, %v414
    %v463 = vpack.c.b16 %v419, %v415
    %v464 = vpack.c.b16 %v424, %v420
    %v465 = vpack.c.b16 %v425, %v421
    %v466 = vpack.c.b16 %v426, %v422
    %v467 = vpack.c.b16 %v427, %v423
    %v468 = vpack.c.b16 %v432, %v428
    %v469 = vpack.c.b16 %v433, %v429
    %v470 = vpack.c.b16 %v434, %v430
    %v471 = vpack.c.b16 %v435, %v431
    %v472 = vpack.c.b16 %v440, %v436
    %v473 = vpack.c.b16 %v441, %v437
    %v474 = vpack.c.b16 %v442, %v438
    %v475 = vpack.c.b16 %v443, %v439
    %508 = vmatpush.bf16.msra.mxu0 %v472
    %509 = vmatpush.bf16.msra.mxu0 %v468
    %510 = vmatpush.bf16.msra.mxu0 %v464
    %511 = vmatpush.bf16.msra.mxu0 %v460
    %512 = vmatpush.bf16.msra.mxu0 %v456
    %513 = vmatpush.bf16.msra.mxu0 %v452
    %514 = vmatpush.bf16.msra.mxu0 %v448
    %515 = vmatpush.bf16.msra.mxu0 %v444
    %516 = vmatmul.bf16.gmra.mxu0 %v346
    %v517 = vpop.f32.mrf.mxu0
    %v518 = vadd.f32 %v296, %v517
    %v519 = vpop.f32.mrf.mxu0
    %v520 = vadd.f32 %v298, %v519
    %521 = vdwg.mxu0
    %522 = vmatpush.bf16.msra.mxu0 %v473
    %523 = vmatpush.bf16.msra.mxu0 %v469
    %524 = vmatpush.bf16.msra.mxu0 %v465
    %525 = vmatpush.bf16.msra.mxu0 %v461
    %526 = vmatpush.bf16.msra.mxu0 %v457
    %527 = vmatpush.bf16.msra.mxu0 %v453
    %528 = vmatpush.bf16.msra.mxu0 %v449
    %529 = vmatpush.bf16.msra.mxu0 %v445
    %530 = vmatmul.bf16.gmra.mxu0 %v346
    %v531 = vpop.f32.mrf.mxu0
    %v532 = vadd.f32 %v310, %v531
    %v533 = vpop.f32.mrf.mxu0
    %v534 = vadd.f32 %v312, %v533
    %535 = vdwg.mxu0
    %536 = vmatpush.bf16.msra.mxu0 %v474
    %537 = vmatpush.bf16.msra.mxu0 %v470
    %538 = vmatpush.bf16.msra.mxu0 %v466
    %539 = vmatpush.bf16.msra.mxu0 %v462
    %540 = vmatpush.bf16.msra.mxu0 %v458
    %541 = vmatpush.bf16.msra.mxu0 %v454
    %542 = vmatpush.bf16.msra.mxu0 %v450
    %543 = vmatpush.bf16.msra.mxu0 %v446
    %544 = vmatmul.bf16.gmra.mxu0 %v346
    %v545 = vpop.f32.mrf.mxu0
    %v546 = vadd.f32 %v324, %v545
    %v547 = vpop.f32.mrf.mxu0
    %v548 = vadd.f32 %v326, %v547
    %549 = vdwg.mxu0
    %550 = vmatpush.bf16.msra.mxu0 %v475
    %551 = vmatpush.bf16.msra.mxu0 %v471
    %552 = vmatpush.bf16.msra.mxu0 %v467
    %553 = vmatpush.bf16.msra.mxu0 %v463
    %554 = vmatpush.bf16.msra.mxu0 %v459
    %555 = vmatpush.bf16.msra.mxu0 %v455
    %556 = vmatpush.bf16.msra.mxu0 %v451
    %557 = vmatpush.bf16.msra.mxu0 %v447
    %558 = vmatmul.bf16.gmra.mxu0 %v346
    %v559 = vpop.f32.mrf.mxu0
    %v560 = vadd.f32 %v338, %v559
    %v561 = vpop.f32.mrf.mxu0
    %v562 = vadd.f32 %v340, %v561
    %563 = vdwg.mxu0
    %v564 = vld [vmem:[%s5] sm:$0xf]
    %v566 = vperm.slane %v564, 0
    %v567 = vperm.slane %v564, 1
    %v568 = vperm.slane %v564, 2
    %v569 = vperm.slane %v564, 3
    %v574 = vadd.f32 %v518, %v566
    %v575 = vadd.f32 %v532, %v567
    %v576 = vadd.f32 %v546, %v568
    %v577 = vadd.f32 %v560, %v569
    %v578 = vadd.f32 %v520, %v566
    %v579 = vadd.f32 %v534, %v567
    %v580 = vadd.f32 %v548, %v568
    %v581 = vadd.f32 %v562, %v569
    %v582 = vxor.u32 %v574, 2147483648
    %v583 = vxor.u32 %v578, 2147483648
    %v584 = vmul.f32 %v582, 1.442695
    %v585 = vpow.pop %v584
    %v586 = vmul.f32 %v583, 1.442695
    %v587 = vpow.pop %v586
    %v588 = vadd.f32 %v585, 1.0
    %v589 = vadd.f32 %v587, 1.0
    %v590 = vrcp.pop %v588
    %v591 = vmul.f32 %v588, %v590
    %v592 = vsub.f32 1.0, %v591
    %v593 = vmul.f32 %v590, %v592
    %v594 = vadd.f32 %v590, %v593
    %vm595 = vweird.f32 %v588
    %vm596 = vweird.f32 %v590
    %vm597 = vmor %vm595, %vm596
    %v598 = vsel %vm597, %v590, %v594
    %v599 = vand.u32 2147483647, %v588
    %vm600 = vcmp.eq.f32.partialorder %v599, 8.507059e+37
    %v601 = vand.u32 %v588, 2147483648
    %v602 = vor.u32 1.1754944e-38, %v601
    %v603 = vsel %vm600, %v602, %v598
    %v604 = vmul.f32 1.0, %v603
    %v605 = vrcp.pop %v589
    %v606 = vmul.f32 %v589, %v605
    %v607 = vsub.f32 1.0, %v606
    %v608 = vmul.f32 %v605, %v607
    %v609 = vadd.f32 %v605, %v608
    %vm610 = vweird.f32 %v589
    %vm611 = vweird.f32 %v605
    %vm612 = vmor %vm610, %vm611
    %v613 = vsel %vm612, %v605, %v609
    %v614 = vand.u32 2147483647, %v589
    %vm615 = vcmp.eq.f32.partialorder %v614, 8.507059e+37
    %v616 = vand.u32 %v589, 2147483648
    %v617 = vor.u32 1.1754944e-38, %v616
    %v618 = vsel %vm615, %v617, %v613
    %v619 = vmul.f32 1.0, %v618
    %v620 = vxor.u32 %v575, 2147483648
    %v621 = vxor.u32 %v579, 2147483648
    %v622 = vmul.f32 %v620, 1.442695
    %v623 = vpow.pop %v622
    %v624 = vmul.f32 %v621, 1.442695
    %v625 = vpow.pop %v624
    %v626 = vadd.f32 %v623, 1.0
    %v627 = vadd.f32 %v625, 1.0
    %v628 = vrcp.pop %v626
    %v629 = vmul.f32 %v626, %v628
    %v630 = vsub.f32 1.0, %v629
    %v631 = vmul.f32 %v628, %v630
    %v632 = vadd.f32 %v628, %v631
    %vm633 = vweird.f32 %v626
    %vm634 = vweird.f32 %v628
    %vm635 = vmor %vm633, %vm634
    %v636 = vsel %vm635, %v628, %v632
    %v637 = vand.u32 2147483647, %v626
    %vm638 = vcmp.eq.f32.partialorder %v637, 8.507059e+37
    %v639 = vand.u32 %v626, 2147483648
    %v640 = vor.u32 1.1754944e-38, %v639
    %v641 = vsel %vm638, %v640, %v636
    %v642 = vmul.f32 1.0, %v641
    %v643 = vrcp.pop %v627
    %v644 = vmul.f32 %v627, %v643
    %v645 = vsub.f32 1.0, %v644
    %v646 = vmul.f32 %v643, %v645
    %v647 = vadd.f32 %v643, %v646
    %vm648 = vweird.f32 %v627
    %vm649 = vweird.f32 %v643
    %vm650 = vmor %vm648, %vm649
    %v651 = vsel %vm650, %v643, %v647
    %v652 = vand.u32 2147483647, %v627
    %vm653 = vcmp.eq.f32.partialorder %v652, 8.507059e+37
    %v654 = vand.u32 %v627, 2147483648
    %v655 = vor.u32 1.1754944e-38, %v654
    %v656 = vsel %vm653, %v655, %v651
    %v657 = vmul.f32 1.0, %v656
    %v658 = vtanh.pop %v576
    %v659 = vtanh.pop %v580
    %v660 = vxor.u32 %v577, 2147483648
    %v661 = vxor.u32 %v581, 2147483648
    %v662 = vmul.f32 %v660, 1.442695
    %v663 = vpow.pop %v662
    %v664 = vmul.f32 %v661, 1.442695
    %v665 = vpow.pop %v664
    %v666 = vadd.f32 %v663, 1.0
    %v667 = vadd.f32 %v665, 1.0
    %v668 = vrcp.pop %v666
    %v669 = vmul.f32 %v666, %v668
    %v670 = vsub.f32 1.0, %v669
    %v671 = vmul.f32 %v668, %v670
    %v672 = vadd.f32 %v668, %v671
    %vm673 = vweird.f32 %v666
    %vm674 = vweird.f32 %v668
    %vm675 = vmor %vm673, %vm674
    %v676 = vsel %vm675, %v668, %v672
    %v677 = vand.u32 2147483647, %v666
    %vm678 = vcmp.eq.f32.partialorder %v677, 8.507059e+37
    %v679 = vand.u32 %v666, 2147483648
    %v680 = vor.u32 1.1754944e-38, %v679
    %v681 = vsel %vm678, %v680, %v676
    %v682 = vmul.f32 1.0, %v681
    %v683 = vrcp.pop %v667
    %v684 = vmul.f32 %v667, %v683
    %v685 = vsub.f32 1.0, %v684
    %v686 = vmul.f32 %v683, %v685
    %v687 = vadd.f32 %v683, %v686
    %vm688 = vweird.f32 %v667
    %vm689 = vweird.f32 %v683
    %vm690 = vmor %vm688, %vm689
    %v691 = vsel %vm690, %v683, %v687
    %v692 = vand.u32 2147483647, %v667
    %vm693 = vcmp.eq.f32.partialorder %v692, 8.507059e+37
    %v694 = vand.u32 %v667, 2147483648
    %v695 = vor.u32 1.1754944e-38, %v694
    %v696 = vsel %vm693, %v695, %v691
    %v697 = vmul.f32 1.0, %v696
    %v698 = vld [vmem:[%s2] sm:$0xff]
    %v699 = vld [vmem:[%s2 + $0x8] sm:$0xff]
    %v700 = vmul.f32 %v604, %v698
    %v701 = vmul.f32 %v619, %v699
    %v702 = vmul.f32 %v642, %v658
    %v703 = vmul.f32 %v657, %v659
    %v704 = vadd.f32 %v700, %v702
    %v705 = vadd.f32 %v701, %v703
    %v706 = vtanh.pop %v704
    %v707 = vtanh.pop %v705
    %v708 = vmul.f32 %v682, %v706
    %v709 = vmul.f32 %v697, %v707
    %710 = vst [vmem:[%s6] sm:$0xff] %v708
    %711 = vst [vmem:[%s6 + $0x8] sm:$0xff] %v709
    %712 = vst [vmem:[%s7] sm:$0xff] %v704
    %713 = vst [vmem:[%s7 + $0x8] sm:$0xff] %v705
    // Predicated region
    $region34: #{lstm_cell_pallas.1} parent=1 // pred_check
      _
    $region35: #{lstm_cell_pallas.1} parent=1 // pred_check_branch
      %715 = sbr.rel (0) target = $region37
    $region36: #{lstm_cell_pallas.1} parent=1 // pred_region
      _
    $region37: #{lstm_cell_pallas.1} parent=1 // pred_fallthru
      _
    // Predicated region
    $region38: #{lstm_cell_pallas.1} parent=1 // pred_check
      _
    $region39: #{lstm_cell_pallas.1} parent=1 // pred_check_branch
      %717 = sbr.rel (0) target = $region41
    $region40: #{lstm_cell_pallas.1} parent=1 // pred_region
      _
    $region41: #{lstm_cell_pallas.1} parent=1 // pred_fallthru
      _
    // Predicated region
    $region42: #{lstm_cell_pallas.1} parent=1 // pred_check
      _
    $region43: #{lstm_cell_pallas.1} parent=1 // pred_check_branch
      %719 = sbr.rel (0) target = $region45
    $region44: #{lstm_cell_pallas.1} parent=1 // pred_region
      _
    $region45: #{lstm_cell_pallas.1} parent=1 // pred_fallthru
      _
    // Predicated region
    $region46: #{lstm_cell_pallas.1} parent=1 // pred_check
      _
    $region47: #{lstm_cell_pallas.1} parent=1 // pred_check_branch
      %721 = sbr.rel (0) target = $region49
    $region48: #{lstm_cell_pallas.1} parent=1 // pred_region
      _
    $region49: #{lstm_cell_pallas.1} parent=1 // pred_fallthru
      _
    %722 = vsyncpa [#allocation3], 1
    %723 = vsyncpa [#allocation5], 1

</llo_original>
